<compile_context>
chip_gen: v7x
topology: tpu7x:2x2x1
jax: 0.10.0
libtpu: 0.0.40
codegen_flags: <defaults>
</compile_context>

<pallas_src>
import functools
import math

import jax
import jax.numpy as jnp
import numpy as np
from jax import lax
from jax.experimental import pallas as pl
from jax.experimental.pallas import tpu as pltpu

EPS = 1e-5
_LANE = 128


def _round_up(x, m):
    return (x + m - 1) // m * m


@functools.lru_cache(maxsize=None)
def _vmem_budget_bytes():
    """Per-kernel VMEM budget: physical capacity minus compiler-scratch headroom."""
    cap = 64 << 20  # conservative fallback (v7x per-core VMEM)
    try:
        cap = int(pltpu.get_tpu_info().vmem_capacity_bytes)
    except Exception:  # interpret mode / older jax -> keep the conservative default
        pass
    headroom = max(16 << 20, cap // 5)  # 64 MiB -> 48 MiB budget, 128 MiB -> ~102 MiB
    return cap - headroom


def _choose_tiles(rows, D, x_itemsize, w_itemsize, tile_m, tile_n, budget):
    """Pick (tm, tn).  tn == D means 'W fully resident' (Path A)."""
    pack = {4: 8, 2: 16, 1: 32}.get(x_itemsize, 8)      # sublane pack per dtype
    tile_m = max(pack, _round_up(tile_m, pack))
    tm_full = rows if rows <= tile_m else tile_m        # no padding needed either way
    small = 8 * D * 4                                   # gamma/beta/wb params

    def fits(tm, tn):
        return (2 * tm * D * x_itemsize                 # x tiles (double-buffered)
                + 2 * D * tn * w_itemsize               # W tiles
                + 2 * tm * tn * x_itemsize              # out tiles
                + small) <= budget

    if tile_n is not None:                              # explicit override (tests / tuning)
        assert tile_n == D or (tile_n % _LANE == 0 and tile_n < D)
        return tm_full, tile_n

    # Path A: whole W resident.
    for tm in (tm_full, min(tm_full, 256), min(tm_full, 128)):
        if fits(tm, D):
            return tm, D
    # Path B: column-tile W; pick the largest lane-aligned tn that fits.
    if D % _LANE == 0:
        for tm in (tm_full, min(tm_full, 256), min(tm_full, 128)):
            for tn in (2048, 1024, 512, 256, 128):
                if tn < D and fits(tm, tn):
                    return tm, tn
    # Last resort (unrealistically large D): smallest legal row tile, full W.
    return min(tm_full, 128), D


def _prenorm_linear_kernel(x_ref, g_ref, b_ref, w_ref, wb_ref, o_ref):
    """out = (LayerNorm(x) * gamma + beta) @ W_cols + wb_cols for one tile."""
    x = x_ref[...].astype(jnp.float32)                              # (TM, D)
    # var = E[x^2] - mean^2: two independent cross-lane reductions (2 XLUs)
    mean = jnp.mean(x, axis=-1, keepdims=True)                      # (TM, 1)
    mean_sq = jnp.mean(x * x, axis=-1, keepdims=True)
    var = mean_sq - mean * mean                                     # biased (PyTorch LN)
    # Fold gamma into the rsqrt scale -> single (x - mean) * scale + beta pass.
    scale = lax.rsqrt(var + EPS) * g_ref[...].astype(jnp.float32)   # rsqrt on EUP
    y = (x - mean) * scale + b_ref[...].astype(jnp.float32)
    # fn = Linear: matmul in the weight's native dtype (bf16 at full MXU rate
    # when the model is bf16), f32 accumulation, bias in f32, one downcast.
    out = jnp.dot(y.astype(w_ref.dtype), w_ref[...],
                  preferred_element_type=jnp.float32)
    out = out + wb_ref[...].astype(jnp.float32)
    o_ref[...] = out.astype(o_ref.dtype)


@functools.partial(jax.jit, static_argnames=("tile_m", "tile_n"))
def prenorm_forward(x, gamma, beta, w, wb, *, tile_m=512, tile_n=None):
    """PreNorm: LayerNorm over the last dim of x, then fn = Linear(D, D)."""
    *lead, D = x.shape
    rows = math.prod(lead) if lead else 1
    assert w.shape == (D, D)

    budget = _vmem_budget_bytes()
    tm, tn = _choose_tiles(rows, D, x.dtype.itemsize, w.dtype.itemsize,
                           tile_m, tile_n, budget)

    x2 = x.reshape(rows, D)                 # no padding: edge blocks masked on store
    gamma2 = gamma.reshape(1, D)
    beta2 = beta.reshape(1, D)
    wb2 = wb.reshape(1, D)

    ni = pl.cdiv(rows, tm)
    nj = pl.cdiv(D, tn)

    vmem_est = (2 * tm * D * x.dtype.itemsize + 2 * D * tn * w.dtype.itemsize
                + 2 * tm * tn * x.dtype.itemsize + 8 * D * 4)
    vmem_limit = int(min(budget, max(32 << 20, vmem_est * 3 // 2)))

    cost = pl.CostEstimate(
        flops=2 * rows * D * D,
        transcendentals=rows * nj,
        bytes_accessed=(nj * rows * D * x.dtype.itemsize      # x reads (per W-col pass)
                        + D * D * w.dtype.itemsize            # W read once
                        + rows * D * x.dtype.itemsize),       # output write
    )

    if tn == D:
        # ---- Path A: W fully VMEM-resident, single grid axis over row tiles.
        grid = (ni,)
        in_specs = [
            pl.BlockSpec((tm, D), lambda i: (i, 0)),    # x row tile
            pl.BlockSpec((1, D), lambda i: (0, 0)),     # gamma
            pl.BlockSpec((1, D), lambda i: (0, 0)),     # beta
            pl.BlockSpec((D, D), lambda i: (0, 0)),     # W (constant block -> DMA'd once)
            pl.BlockSpec((1, D), lambda i: (0, 0)),     # fn bias
        ]
        out_specs = pl.BlockSpec((tm, D), lambda i: (i, 0))
        dims = ("parallel",)
    else:
        # ---- Path B (large D): W-column tiles OUTER, row tiles INNER.
        # W HBM traffic = D*D (read once); x is re-streamed D/tn times and the
        # cheap LN is recomputed per column tile (hides under the MXU matmul).
        # No cross-step scratch, so the row axis is safe to shard across cores.
        grid = (nj, ni)
        in_specs = [
            pl.BlockSpec((tm, D), lambda j, i: (i, 0)),
            pl.BlockSpec((1, D), lambda j, i: (0, 0)),
            pl.BlockSpec((1, D), lambda j, i: (0, 0)),
            pl.BlockSpec((D, tn), lambda j, i: (0, j)),
            pl.BlockSpec((1, tn), lambda j, i: (0, j)),
        ]
        out_specs = pl.BlockSpec((tm, tn), lambda j, i: (i, j))
        dims = ("arbitrary", "parallel")   # shard rows, not W columns (less extra traffic)

    out2 = pl.pallas_call(
        _prenorm_linear_kernel,
        out_shape=jax.ShapeDtypeStruct((rows, D), x.dtype),
        grid_spec=pltpu.PrefetchScalarGridSpec(
            num_scalar_prefetch=0,
            grid=grid,
            in_specs=in_specs,
            out_specs=out_specs,
        ),
        compiler_params=pltpu.CompilerParams(
            dimension_semantics=dims,
            vmem_limit_bytes=vmem_limit,
        ),
        cost_estimate=cost,
    )(x2, gamma2, beta2, w, wb2)

    return out2.reshape(x.shape)


def _reference(x, gamma, beta, w, wb):
    xf = x.astype(jnp.float32)
    mean = jnp.mean(xf, axis=-1, keepdims=True)
    var = jnp.mean((xf - mean) ** 2, axis=-1, keepdims=True)
    y = (xf - mean) / jnp.sqrt(var + EPS) * gamma + beta
    return y @ w.astype(jnp.float32) + wb.astype(jnp.float32)


if __name__ == "__main__":
    key = jax.random.PRNGKey(0)
    kx, kg, kb, kw, kwb = jax.random.split(key, 5)

    def make(B, N, D, dtype):
        x = jax.random.normal(kx, (B, N, D), dtype=jnp.float32)
        gamma = 1.0 + 0.1 * jax.random.normal(kg, (D,), dtype=jnp.float32)
        beta = 0.1 * jax.random.normal(kb, (D,), dtype=jnp.float32)
        w = jax.random.normal(kw, (D, D), dtype=jnp.float32) / np.sqrt(D)
        wb = 0.05 * jax.random.normal(kwb, (D,), dtype=jnp.float32)
        return x.astype(dtype), gamma, beta, w.astype(dtype), wb.astype(dtype)

    # 1) f32, lane-dense D=128, single row tile (Path A: W resident).
    x, gamma, beta, w, bias = make(2, 8, 128, jnp.float32)
    out = jax.block_until_ready(prenorm_forward(x, gamma, beta, w, bias))
    ref = _reference(x, gamma, beta, w, bias)
    assert out.shape == x.shape
    np.testing.assert_allclose(np.asarray(out), np.asarray(ref), rtol=5e-5, atol=5e-5)

    # 2) bf16 activations/weights: bf16 MXU route with f32 accumulation.
    x_b, g_b, b_b, w_b, bias_b = make(2, 8, 128, jnp.bfloat16)
    out_b = jax.block_until_ready(prenorm_forward(x_b, g_b, b_b, w_b, bias_b))
    ref_b = _reference(x_b, g_b, b_b, w_b, bias_b)
    np.testing.assert_allclose(np.asarray(out_b).astype(np.float32),
                               np.asarray(ref_b), rtol=3e-2, atol=3e-2)

    # 3) Non-divisible row count -> masked edge block, no wrapper-side padding.
    x, gamma, beta, w, bias = make(2, 80, 128, jnp.float32)   # 160 rows, tm=64 -> 3 blocks
    out = jax.block_until_ready(prenorm_forward(x, gamma, beta, w, bias, tile_m=64))
    ref = _reference(x, gamma, beta, w, bias)
    np.testing.assert_allclose(np.asarray(out), np.asarray(ref), rtol=5e-5, atol=5e-5)

    # 4) Column-tiled weight path (Path B: j outer / i inner), forced via tile_n.
    x, gamma, beta, w, bias = make(2, 16, 256, jnp.float32)   # 32 rows, D=256, tn=128
    out = jax.block_until_ready(prenorm_forward(x, gamma, beta, w, bias, tile_n=128))
    ref = _reference(x, gamma, beta, w, bias)
    np.testing.assert_allclose(np.asarray(out), np.asarray(ref), rtol=5e-5, atol=5e-5)

    # TODO(synk): PreNorm wraps an arbitrary `fn`; only a Linear(D, D) fn is
    # fused after the LayerNorm here — other fns would need their own kernels.
    print("KERNEL_OK")
</pallas_src>

<mosaic_0001>
module attributes {stable_mosaic.version = 11 : i64} {
  func.func @_prenorm_linear_kernel(%arg0: i32, %arg1: memref<16x128xf32, #tpu.memory_space<vmem>>, %arg2: memref<1x128xf32, #tpu.memory_space<vmem>>, %arg3: memref<1x128xf32, #tpu.memory_space<vmem>>, %arg4: memref<128x128xf32, #tpu.memory_space<vmem>>, %arg5: memref<1x128xf32, #tpu.memory_space<vmem>>, %arg6: memref<16x128xf32, #tpu.memory_space<vmem>>) attributes {dimension_semantics = [#tpu.dimension_semantics<parallel>], iteration_bounds = array<i64: 1>, scalar_prefetch = 0 : i64, scratch_operands = 0 : i64, tpu.core_type = #tpu.core_type<tc>, window_params = [{transform_indices = @transform_0, window_bounds = array<i64: 16, 128>}, {pipeline_mode = #tpu.pipeline_mode<synchronous>, transform_indices = @transform_1, window_bounds = array<i64: 1, 128>}, {pipeline_mode = #tpu.pipeline_mode<synchronous>, transform_indices = @transform_2, window_bounds = array<i64: 1, 128>}, {pipeline_mode = #tpu.pipeline_mode<synchronous>, transform_indices = @transform_3, window_bounds = array<i64: 128, 128>}, {pipeline_mode = #tpu.pipeline_mode<synchronous>, transform_indices = @transform_4, window_bounds = array<i64: 1, 128>}, {transform_indices = @transform_5, window_bounds = array<i64: 16, 128>}]} {
    %c0 = arith.constant 0 : index
    %c0_0 = arith.constant 0 : index
    %0 = vector.load %arg1[%c0, %c0_0] : memref<16x128xf32, #tpu.memory_space<vmem>>, vector<16x128xf32>
    %cst = arith.constant dense<0.000000e+00> : vector<16xf32>
    %1 = vector.multi_reduction <add>, %0, %cst [1] : vector<16x128xf32> to vector<16xf32>
    %2 = vector.shape_cast %1 : vector<16xf32> to vector<16x1xf32>
    %cst_1 = arith.constant 1.280000e+02 : f32
    %3 = vector.broadcast %cst_1 : f32 to vector<16x1xf32>
    %4 = arith.divf %2, %3 : vector<16x1xf32>
    %5 = arith.mulf %0, %0 : vector<16x128xf32>
    %cst_2 = arith.constant dense<0.000000e+00> : vector<16xf32>
    %6 = vector.multi_reduction <add>, %5, %cst_2 [1] : vector<16x128xf32> to vector<16xf32>
    %7 = vector.shape_cast %6 : vector<16xf32> to vector<16x1xf32>
    %cst_3 = arith.constant 1.280000e+02 : f32
    %8 = vector.broadcast %cst_3 : f32 to vector<16x1xf32>
    %9 = arith.divf %7, %8 : vector<16x1xf32>
    %10 = arith.mulf %4, %4 : vector<16x1xf32>
    %11 = arith.subf %9, %10 : vector<16x1xf32>
    %cst_4 = arith.constant 9.99999974E-6 : f32
    %12 = vector.broadcast %cst_4 : f32 to vector<16x1xf32>
    %13 = arith.addf %11, %12 : vector<16x1xf32>
    %14 = math.rsqrt %13 : vector<16x1xf32>
    %c0_5 = arith.constant 0 : index
    %c0_6 = arith.constant 0 : index
    %15 = vector.load %arg2[%c0_5, %c0_6] : memref<1x128xf32, #tpu.memory_space<vmem>>, vector<1x128xf32>
    %16 = vector.broadcast %14 : vector<16x1xf32> to vector<16x128xf32>
    %17 = vector.broadcast %15 : vector<1x128xf32> to vector<16x128xf32>
    %18 = arith.mulf %16, %17 : vector<16x128xf32>
    %19 = vector.broadcast %4 : vector<16x1xf32> to vector<16x128xf32>
    %20 = arith.subf %0, %19 : vector<16x128xf32>
    %21 = arith.mulf %20, %18 : vector<16x128xf32>
    %c0_7 = arith.constant 0 : index
    %c0_8 = arith.constant 0 : index
    %22 = vector.load %arg3[%c0_7, %c0_8] : memref<1x128xf32, #tpu.memory_space<vmem>>, vector<1x128xf32>
    %23 = vector.broadcast %22 : vector<1x128xf32> to vector<16x128xf32>
    %24 = arith.addf %21, %23 : vector<16x128xf32>
    %c0_9 = arith.constant 0 : index
    %c0_10 = arith.constant 0 : index
    %25 = vector.load %arg4[%c0_9, %c0_10] : memref<128x128xf32, #tpu.memory_space<vmem>>, vector<128x128xf32>
    %cst_11 = arith.constant dense<0.000000e+00> : vector<16x128xf32>
    %26 = tpu.matmul %24, %25, %cst_11 {dimension_numbers = #tpu.dot_dimension_numbers<[1], [0], [0], [1], [0, 0, 1, 1], [], []>} : vector<16x128xf32>, vector<128x128xf32>, vector<16x128xf32> -> vector<16x128xf32>
    %c0_12 = arith.constant 0 : index
    %c0_13 = arith.constant 0 : index
    %27 = vector.load %arg5[%c0_12, %c0_13] : memref<1x128xf32, #tpu.memory_space<vmem>>, vector<1x128xf32>
    %28 = vector.broadcast %27 : vector<1x128xf32> to vector<16x128xf32>
    %29 = arith.addf %26, %28 : vector<16x128xf32>
    %c0_14 = arith.constant 0 : index
    %c0_15 = arith.constant 0 : index
    %30 = vector.load %arg6[%c0_14, %c0_15] : memref<16x128xf32, #tpu.memory_space<vmem>>, vector<16x128xf32>
    tpu.vector_store %arg6[%c0_14, %c0_15], %29 {strides = array<i32>} : memref<16x128xf32, #tpu.memory_space<vmem>>, vector<16x128xf32>,
    return
  }
  func.func @transform_0(%arg0: i32) -> (i32, i32) {
    %c0_i32 = arith.constant 0 : i32
    %c0_i32_0 = arith.constant 0 : i32
    return %arg0, %c0_i32 : i32, i32
  }
  func.func @transform_1(%arg0: i32) -> (i32, i32) {
    %c0_i32 = arith.constant 0 : i32
    %c0_i32_0 = arith.constant 0 : i32
    %c0_i32_1 = arith.constant 0 : i32
    return %c0_i32, %c0_i32_0 : i32, i32
  }
  func.func @transform_2(%arg0: i32) -> (i32, i32) {
    %c0_i32 = arith.constant 0 : i32
    %c0_i32_0 = arith.constant 0 : i32
    %c0_i32_1 = arith.constant 0 : i32
    return %c0_i32, %c0_i32_0 : i32, i32
  }
  func.func @transform_3(%arg0: i32) -> (i32, i32) {
    %c0_i32 = arith.constant 0 : i32
    %c0_i32_0 = arith.constant 0 : i32
    %c0_i32_1 = arith.constant 0 : i32
    return %c0_i32, %c0_i32_0 : i32, i32
  }
  func.func @transform_4(%arg0: i32) -> (i32, i32) {
    %c0_i32 = arith.constant 0 : i32
    %c0_i32_0 = arith.constant 0 : i32
    %c0_i32_1 = arith.constant 0 : i32
    return %c0_i32, %c0_i32_0 : i32, i32
  }
  func.func @transform_5(%arg0: i32) -> (i32, i32) {
    %c0_i32 = arith.constant 0 : i32
    %c0_i32_0 = arith.constant 0 : i32
    return %arg0, %c0_i32 : i32, i32
  }
}

</mosaic_0001>

<llo_original>
// kernel: prenorm_forward.1
$region0: #{prenorm_forward.1}
  #allocation0 [shape = 'u32[]', space=smem, size = 0x4, offset = 0x4, fixed_abs, tag = 'smem constant byte address 0x4 - core index']
  #allocation1 [shape = 'u32[144,128]{1,0:T(1,128)}', space=vmem, size = 0x12000, scoped, tag = 'internal scratch']
  %s0 = inlined_call_operand.hbm [shape: f32[16,128], index: 0, kind: input, shape index: {}]
  %s1 = inlined_call_operand.vmem [shape: f32[1,128], index: 1, kind: input, shape index: {}]
  %s2 = inlined_call_operand.vmem [shape: f32[1,128], index: 2, kind: input, shape index: {}]
  %s3 = inlined_call_operand.hbm [shape: f32[128,128], index: 3, kind: input, shape index: {}]
  %s4 = inlined_call_operand.vmem [shape: f32[1,128], index: 4, kind: input, shape index: {}]
  %s5 = inlined_call_operand.hbm [shape: f32[16,128], index: 5, kind: output, shape index: {}]
  %s6 = sld [smem:[#allocation0]]
  $region38: #{prenorm_forward.1} parent=0
    _
  %s8 = ssub.s32 1, %s6
  %s9 = scalar_select 0, %s8, %s6
  $region1: #{prenorm_forward.1} parent=0
    #allocation2 [shape = 'u8[8192]{0}', space=vmem, size = 0x2000, scoped, tag = 'input window, operand 0, single buffered']
    #allocation3 [shape = 's32[1]{0}', space=sflag, size = 0x4, scoped, tag = 'scoped memory for prenorm_forward.1']
    #allocation4 [shape = 's32[1]{0}', space=sflag, size = 0x4, scoped, tag = 'scoped memory for prenorm_forward.1']
    #allocation5 [shape = 'u8[65536]{0}', space=vmem, size = 0x10000, scoped, tag = 'input window, operand 3, single buffered']
    #allocation6 [shape = 's32[1]{0}', space=sflag, size = 0x4, scoped, tag = 'scoped memory for prenorm_forward.1']
    #allocation7 [shape = 'u8[8192]{0}', space=vmem, size = 0x2000, scoped, tag = 'output window, operand 0, single buffered']
    %10 = vsyncpa [#allocation3], 0
    %11 = vsyncpa [#allocation6], 0
    %12 = vsyncpa [#allocation4], 0
    // Predicated region
    $region2: #{prenorm_forward.1} parent=1 // pred_check
      _
    $region3: #{prenorm_forward.1} parent=1 // pred_check_branch
      %14 = sbr.rel (0) target = $region5
    $region4: #{prenorm_forward.1} parent=1 // pred_region
      %s16 = ssub.s32 256, 256
      %17 = vsyncadd [#allocation3], %s16
      %s18 = sshll.u32 [#allocation2], 4
      %s19 = int_to_ptr.vmem [resolvable:$true] %s18
      %24 = dma.hbm_to_vmem [thread:$0]  %s0, 256, %s19, [#allocation3], 128, 128, 8
    $region5: #{prenorm_forward.1} parent=1 // pred_fallthru
      _
    // Predicated region
    $region6: #{prenorm_forward.1} parent=1 // pred_check
      _
    $region7: #{prenorm_forward.1} parent=1 // pred_check_branch
      %26 = sbr.rel (0) target = $region9
    $region8: #{prenorm_forward.1} parent=1 // pred_region
      _
    $region9: #{prenorm_forward.1} parent=1 // pred_fallthru
      _
    // Predicated region
    $region10: #{prenorm_forward.1} parent=1 // pred_check
      _
    $region11: #{prenorm_forward.1} parent=1 // pred_check_branch
      %28 = sbr.rel (0) target = $region13
    $region12: #{prenorm_forward.1} parent=1 // pred_region
      _
    $region13: #{prenorm_forward.1} parent=1 // pred_fallthru
      _
    // Predicated region
    $region14: #{prenorm_forward.1} parent=1 // pred_check
      _
    $region15: #{prenorm_forward.1} parent=1 // pred_check_branch
      %30 = sbr.rel (0) target = $region17
    $region16: #{prenorm_forward.1} parent=1 // pred_region
      %s32 = ssub.s32 2048, 2048
      %33 = vsyncadd [#allocation6], %s32
      %s34 = sshll.u32 [#allocation5], 4
      %s35 = int_to_ptr.vmem [resolvable:$true] %s34
      %40 = dma.hbm_to_vmem [thread:$0]  %s3, 2048, %s35, [#allocation6], 128, 128, 8
    $region17: #{prenorm_forward.1} parent=1 // pred_fallthru
      _
    // Predicated region
    $region18: #{prenorm_forward.1} parent=1 // pred_check
      _
    $region19: #{prenorm_forward.1} parent=1 // pred_check_branch
      %42 = sbr.rel (0) target = $region21
    $region20: #{prenorm_forward.1} parent=1 // pred_region
      _
    $region21: #{prenorm_forward.1} parent=1 // pred_fallthru
      _
    // Predicated region
    $region22: #{prenorm_forward.1} parent=1 // pred_check
      _
    $region23: #{prenorm_forward.1} parent=1 // pred_check_branch
      %44 = sbr.rel (0) target = $region25
    $region24: #{prenorm_forward.1} parent=1 // pred_region
      %45 = dma.done [#allocation3], 256
    $region25: #{prenorm_forward.1} parent=1 // pred_fallthru
      _
    // Predicated region
    $region26: #{prenorm_forward.1} parent=1 // pred_check
      _
    $region27: #{prenorm_forward.1} parent=1 // pred_check_branch
      %47 = sbr.rel (0) target = $region29
    $region28: #{prenorm_forward.1} parent=1 // pred_region
      %48 = dma.done [#allocation6], 2048
    $region29: #{prenorm_forward.1} parent=1 // pred_fallthru
      _
    %v49 = vld [vmem:[#allocation2] sm:$0xff]
    %v50 = vld [vmem:[#allocation2 + $0x8] sm:$0xff]
    %51 = vadd.xlane.f32.xlu0 %v49
    %v52 = vpop.xlane.xlu0 %51
    %53 = vadd.xlane.f32.xlu0 %v50
    %v54 = vpop.xlane.xlu0 %53
    %v55 = vrcp.pop 128.0
    %v56 = vmul.f32 %v52, %v55
    %v57 = vmul.f32 %v54, %v55
    %v58 = vmul.f32 %v49, %v49
    %v59 = vmul.f32 %v50, %v50
    %60 = vadd.xlane.f32.xlu0 %v58
    %v61 = vpop.xlane.xlu0 %60
    %62 = vadd.xlane.f32.xlu0 %v59
    %v63 = vpop.xlane.xlu0 %62
    %v64 = vmul.f32 %v61, %v55
    %v65 = vmul.f32 %v63, %v55
    %v66 = vmul.f32 %v56, %v56
    %v67 = vmul.f32 %v57, %v57
    %v68 = vsub.f32 %v64, %v66
    %v69 = vsub.f32 %v65, %v67
    %v70 = vadd.f32 %v68, 1e-05
    %v71 = vadd.f32 %v69, 1e-05
    %v72 = vrsqrt.pop %v70
    %v73 = vrsqrt.pop %v71
    %v74 = vld [vmem:[%s1] sm:$0x1]
    %v76 = vlaneseq
    %v77 = vshrl.u32 %v76, 7
    %v78 = vsub.s32 0, %v77
    %v79 = vrot.slane %v74, %v78
    %v81 = vmul.f32 %v72, %v79
    %v82 = vmul.f32 %v73, %v79
    %v83 = vsub.f32 %v49, %v56
    %v84 = vsub.f32 %v50, %v57
    %v85 = vmul.f32 %v83, %v81
    %v86 = vmul.f32 %v84, %v82
    %v87 = vld [vmem:[%s2] sm:$0x1]
    %v89 = vlaneseq
    %v90 = vshrl.u32 %v89, 7
    %v91 = vsub.s32 0, %v90
    %v92 = vrot.slane %v87, %v91
    %v94 = vadd.f32 %v85, %v92
    %v95 = vadd.f32 %v86, %v92
    %v96 = vld [vmem:[#allocation5] sm:$0xff]
    %v97 = vld [vmem:[#allocation5 + $0x8] sm:$0xff]
    %v98 = vld [vmem:[#allocation5 + $0x10] sm:$0xff]
    %v99 = vld [vmem:[#allocation5 + $0x18] sm:$0xff]
    %v100 = vld [vmem:[#allocation5 + $0x20] sm:$0xff]
    %v101 = vld [vmem:[#allocation5 + $0x28] sm:$0xff]
    %v102 = vld [vmem:[#allocation5 + $0x30] sm:$0xff]
    %v103 = vld [vmem:[#allocation5 + $0x38] sm:$0xff]
    %v104 = vld [vmem:[#allocation5 + $0x40] sm:$0xff]
    %v105 = vld [vmem:[#allocation5 + $0x48] sm:$0xff]
    %v106 = vld [vmem:[#allocation5 + $0x50] sm:$0xff]
    %v107 = vld [vmem:[#allocation5 + $0x58] sm:$0xff]
    %v108 = vld [vmem:[#allocation5 + $0x60] sm:$0xff]
    %v109 = vld [vmem:[#allocation5 + $0x68] sm:$0xff]
    %v110 = vld [vmem:[#allocation5 + $0x70] sm:$0xff]
    %v111 = vld [vmem:[#allocation5 + $0x78] sm:$0xff]
    %v112 = vld [vmem:[%s4] sm:$0x1]
    %v114 = vlaneseq
    %v115 = vshrl.u32 %v114, 7
    %v116 = vsub.s32 0, %v115
    %v117 = vrot.slane %v112, %v116
    %119 = vmatprep.subr.mxu0 0.0
    %120 = vmatpush1.msra.mxu0 %v96
    %121 = vmatprep.subr.mxu0 0.0
    %122 = vmatpush1.msra.mxu0 %v97
    %123 = vmatprep.subr.mxu0 0.0
    %124 = vmatpush1.msra.mxu0 %v98
    %125 = vmatprep.subr.mxu0 0.0
    %126 = vmatpush1.msra.mxu0 %v99
    %127 = vmatprep.subr.mxu0 0.0
    %128 = vmatpush1.msra.mxu0 %v100
    %129 = vmatprep.subr.mxu0 0.0
    %130 = vmatpush1.msra.mxu0 %v101
    %131 = vmatprep.subr.mxu0 0.0
    %132 = vmatpush1.msra.mxu0 %v102
    %133 = vmatprep.subr.mxu0 0.0
    %134 = vmatpush1.msra.mxu0 %v103
    %135 = vmatprep.subr.mxu0 0.0
    %136 = vmatpush1.msra.mxu0 %v104
    %137 = vmatprep.subr.mxu0 0.0
    %138 = vmatpush1.msra.mxu0 %v105
    %139 = vmatprep.subr.mxu0 0.0
    %140 = vmatpush1.msra.mxu0 %v106
    %141 = vmatprep.subr.mxu0 0.0
    %142 = vmatpush1.msra.mxu0 %v107
    %143 = vmatprep.subr.mxu0 0.0
    %144 = vmatpush1.msra.mxu0 %v108
    %145 = vmatprep.subr.mxu0 0.0
    %146 = vmatpush1.msra.mxu0 %v109
    %147 = vmatprep.subr.mxu0 0.0
    %148 = vmatpush1.msra.mxu0 %v110
    %149 = vmatprep.subr.mxu0 0.0
    %150 = vmatpush1.msra.mxu0 %v111
    %151 = vmatprep.subr.mxu0 0.0
    %152 = vmatpush1.msra.mxu0 0.0
    %153 = vmatprep.subr.mxu0 0.0
    %154 = vmatpush1.msra.mxu0 0.0
    %155 = vmatprep.subr.mxu0 0.0
    %156 = vmatpush1.msra.mxu0 0.0
    %157 = vmatprep.subr.mxu0 0.0
    %158 = vmatpush1.msra.mxu0 0.0
    %159 = vmatprep.subr.mxu0 0.0
    %160 = vmatpush1.msra.mxu0 0.0
    %161 = vmatprep.subr.mxu0 0.0
    %162 = vmatpush1.msra.mxu0 0.0
    %163 = vmatprep.subr.mxu0 0.0
    %164 = vmatpush1.msra.mxu0 0.0
    %165 = vmatprep.subr.mxu0 0.0
    %166 = vmatpush1.msra.mxu0 0.0
    %167 = vmatprep.subr.mxu0 0.0
    %168 = vmatpush1.msra.mxu0 0.0
    %169 = vmatprep.subr.mxu0 0.0
    %170 = vmatpush1.msra.mxu0 0.0
    %171 = vmatprep.subr.mxu0 0.0
    %172 = vmatpush1.msra.mxu0 0.0
    %173 = vmatprep.subr.mxu0 0.0
    %174 = vmatpush1.msra.mxu0 0.0
    %175 = vmatprep.subr.mxu0 0.0
    %176 = vmatpush1.msra.mxu0 0.0
    %177 = vmatprep.subr.mxu0 0.0
    %178 = vmatpush1.msra.mxu0 0.0
    %179 = vmatprep.subr.mxu0 0.0
    %180 = vmatpush1.msra.mxu0 0.0
    %181 = vmatprep.subr.mxu0 0.0
    %182 = vmatpush1.msra.mxu0 0.0
    %183 = vmatprep.mubr.f32.mxu0 0.0
    %184 = vmatmul.mubr.f32.gmra.mrb[0].mxu0 %v94
    %v185 = vpop.f32.mrb[0].mxu0
    %v186 = vadd.f32 %v117, %v185
    %v187 = vpop.f32.mrb[0].mxu0
    %188 = vmatprep.mubr.f32.mxu0 0.0
    %189 = vmatmul.mubr.f32.gmra.mrb[0].mxu0 %v95
    %v190 = vpop.f32.mrb[0].mxu0
    %v191 = vadd.f32 %v117, %v190
    %v192 = vpop.f32.mrb[0].mxu0
    %193 = vdwg.mxu0
    %194 = vst [vmem:[#allocation7] sm:$0xff] %v186
    %195 = vst [vmem:[#allocation7 + $0x8] sm:$0xff] %v191
    // Predicated region
    $region30: #{prenorm_forward.1} parent=1 // pred_check
      _
    $region31: #{prenorm_forward.1} parent=1 // pred_check_branch
      %197 = sbr.rel (0) target = $region33
    $region32: #{prenorm_forward.1} parent=1 // pred_region
      %s199 = ssub.s32 256, 256
      %200 = vsyncadd [#allocation4], %s199
      %s201 = sshll.u32 [#allocation7], 4
      %s202 = int_to_ptr.vmem [resolvable:$true] %s201
      %207 = dma.vmem_to_hbm [thread:$0]  %s202, 256, %s5, [#allocation4], 128, 128, 8
    $region33: #{prenorm_forward.1} parent=1 // pred_fallthru
      _
    // Predicated region
    $region34: #{prenorm_forward.1} parent=1 // pred_check
      _
    $region35: #{prenorm_forward.1} parent=1 // pred_check_branch
      %209 = sbr.rel (0) target = $region37
    $region36: #{prenorm_forward.1} parent=1 // pred_region
      %210 = dma.done [#allocation4], 256
    $region37: #{prenorm_forward.1} parent=1 // pred_fallthru
      _
    %211 = vsyncpa [#allocation3], 1
    %212 = vsyncpa [#allocation6], 1
    %213 = vsyncpa [#allocation4], 1

</llo_original>
